<compile_context>
chip_gen: v5e
topology: v5e:2x2
jax: 0.10.0
libtpu: 0.0.40
codegen_flags: <defaults>
</compile_context>

<pallas_src>
import jax
import jax.numpy as jnp
from jax.experimental import pallas as pl
from jax.experimental.pallas import tpu as pltpu

LANE = 128     # vreg lane width
SUBLANE = 8    # vreg sublane width


def _round_up(x, m):
    return ((x + m - 1) // m) * m


def _cdiv(a, b):
    return (a + b - 1) // b


def mlp_kernel(x_ref, w1_ref, b1_ref, w2_ref, b2_ref, o_ref):
    # hidden = relu(x @ W1 + b1): cast the activation tile to bf16 on the fly
    # (MXU operands), accumulate in f32, bias/ReLU in f32 on the VPU.
    x = x_ref[...].astype(jnp.bfloat16)
    h = jnp.dot(x, w1_ref[...], preferred_element_type=jnp.float32)
    h = jnp.maximum(h + b1_ref[...], 0.0)
    # predict = hidden @ W2 + b2, written at the true (unpadded) output width.
    out = jnp.dot(h.astype(jnp.bfloat16), w2_ref[...],
                  preferred_element_type=jnp.float32)
    o_ref[...] = (out + b2_ref[...]).astype(o_ref.dtype)


def prepare_params(w1, b1, w2, b2):
    """One-time (init-path) weight padding + bf16 cast.

    Only the hidden dim H is zero-padded to a 128-lane multiple (padding is
    exact: padded h columns are relu(0+0)=0 and padded W2 rows are 0).
    F and n_output are left at their true sizes so the activation read and
    output write streams carry no padding.
    """
    F, H = w1.shape
    O = w2.shape[1]
    Hp = _round_up(H, LANE)
    w1p = jnp.zeros((F, Hp), jnp.bfloat16).at[:, :H].set(w1.astype(jnp.bfloat16))
    b1p = jnp.zeros((1, Hp), jnp.float32).at[:, :H].set(b1.astype(jnp.float32))
    w2p = jnp.zeros((Hp, O), jnp.bfloat16).at[:H, :].set(w2.astype(jnp.bfloat16))
    b2p = b2.astype(jnp.float32).reshape(1, O)
    return w1p, b1p, w2p, b2p


def net_forward(x, w1p, b1p, w2p, b2p, *, block_rows=1024):
    """Pallas forward pass of Net.

    x:   (B, n_feature) f32 (unpadded, read directly by the kernel)
    w1p: (n_feature, Hp) bf16   b1p: (1, Hp) f32     [Hp = round_up(H, 128)]
    w2p: (Hp, n_output) bf16    b2p: (1, n_output) f32
    returns (B, n_output) f32
    """
    B, F = x.shape
    Hp = w1p.shape[1]
    O = w2p.shape[1]

    # Balanced batch tiling with a ragged last block (no padded copy of x):
    # at least 2 tiles when B allows it so v7x's two TensorCores both work.
    nt = max(_cdiv(B, block_rows), min(2, _cdiv(B, SUBLANE)))
    TM = min(_round_up(_cdiv(B, nt), SUBLANE), B)
    grid = (_cdiv(B, TM),)

    # Exact VMEM accounting (Pallas double-buffers every BlockSpec by
    # default, including the constant-index weights) + per-generation cap.
    try:
        vmem_cap = int(pltpu.get_tpu_info().vmem_capacity_bytes)
    except Exception:  # pragma: no cover - conservative (v7x-sized) fallback
        vmem_cap = 64 << 20
    est = (2 * TM * F * 4                    # x tiles (f32, double-buffered)
           + 2 * TM * O * 4                  # out tiles (f32, double-buffered)
           + 2 * (F * Hp + Hp * O) * 2       # bf16 weights (2 buffers each)
           + 2 * (Hp + O) * 4                # biases
           + TM * Hp * 4)                    # f32 hidden intermediate
    vmem_limit = int(min(max(2 * est, 16 << 20), int(0.75 * vmem_cap)))

    cost = pl.CostEstimate(
        flops=2 * B * (F * Hp + Hp * O),
        transcendentals=0,
        bytes_accessed=(B * F * 4 + (F * Hp + Hp * O) * 2
                        + (Hp + O) * 4 + B * O * 4),
    )

    return pl.pallas_call(
        mlp_kernel,
        out_shape=jax.ShapeDtypeStruct((B, O), jnp.float32),
        grid=grid,
        in_specs=[
            pl.BlockSpec((TM, F), lambda i: (i, 0)),    # x tile (pipelined)
            pl.BlockSpec((F, Hp), lambda i: (0, 0)),    # W1 (VMEM-resident)
            pl.BlockSpec((1, Hp), lambda i: (0, 0)),    # b1 (VMEM-resident)
            pl.BlockSpec((Hp, O), lambda i: (0, 0)),    # W2 (VMEM-resident)
            pl.BlockSpec((1, O), lambda i: (0, 0)),     # b2 (VMEM-resident)
        ],
        out_specs=pl.BlockSpec((TM, O), lambda i: (i, 0)),
        compiler_params=pltpu.CompilerParams(
            dimension_semantics=("parallel",),
            vmem_limit_bytes=vmem_limit,
        ),
        cost_estimate=cost,
    )(x, w1p, b1p, w2p, b2p)


def init_linear_params(key, in_features, out_features):
    """Mimic torch.nn.Linear default init: U(-1/sqrt(in), 1/sqrt(in))."""
    kw, kb = jax.random.split(key)
    bound = 1.0 / jnp.sqrt(jnp.float32(in_features))
    # stored as (in, out) == transpose of PyTorch's (out, in) weight
    w = jax.random.uniform(kw, (in_features, out_features), jnp.float32,
                           minval=-bound, maxval=bound)
    b = jax.random.uniform(kb, (1, out_features), jnp.float32,
                           minval=-bound, maxval=bound)
    return w, b


if __name__ == "__main__":
    # Small shapes consistent with Net(n_feature, n_hidden, n_output).
    batch, n_feature, n_hidden, n_output = 8, 16, 32, 4

    key = jax.random.PRNGKey(0)
    kx, k1, k2 = jax.random.split(key, 3)

    x = jax.random.normal(kx, (batch, n_feature), jnp.float32)
    w1, b1 = init_linear_params(k1, n_feature, n_hidden)
    w2, b2 = init_linear_params(k2, n_hidden, n_output)

    # Pad/cast the weights once, outside the per-call (jitted) forward path.
    w1p, b1p, w2p, b2p = prepare_params(w1, b1, w2, b2)

    out = jax.jit(net_forward)(x, w1p, b1p, w2p, b2p)
    jax.block_until_ready(out)
    assert out.shape == (batch, n_output)

    # Reference with the same bf16-operand / f32-accumulate numerics.
    ref_h = jnp.maximum(
        jnp.dot(x.astype(jnp.bfloat16), w1.astype(jnp.bfloat16),
                preferred_element_type=jnp.float32) + b1, 0.0)
    ref_bf16 = jnp.dot(ref_h.astype(jnp.bfloat16), w2.astype(jnp.bfloat16),
                       preferred_element_type=jnp.float32) + b2
    assert jnp.allclose(out, ref_bf16, atol=1e-3, rtol=1e-3)

    # Loose check against the pure-f32 reference (bf16 operand rounding).
    ref_f32 = jnp.maximum(x @ w1 + b1, 0.0) @ w2 + b2
    assert jnp.allclose(out, ref_f32, atol=5e-2, rtol=5e-2)

    print("KERNEL_OK")
</pallas_src>

<mosaic_0001>
module attributes {stable_mosaic.version = 11 : i64} {
  func.func @mlp_kernel(%arg0: i32, %arg1: memref<8x16xf32, #tpu.memory_space<vmem>>, %arg2: memref<16x128xbf16, #tpu.memory_space<vmem>>, %arg3: memref<1x128xf32, #tpu.memory_space<vmem>>, %arg4: memref<128x4xbf16, #tpu.memory_space<vmem>>, %arg5: memref<1x4xf32, #tpu.memory_space<vmem>>, %arg6: memref<8x4xf32, #tpu.memory_space<vmem>>) attributes {dimension_semantics = [#tpu.dimension_semantics<parallel>], iteration_bounds = array<i64: 1>, scalar_prefetch = 0 : i64, scratch_operands = 0 : i64, tpu.core_type = #tpu.core_type<tc>, window_params = [{transform_indices = @transform_0, window_bounds = array<i64: 8, 16>}, {pipeline_mode = #tpu.pipeline_mode<synchronous>, transform_indices = @transform_1, window_bounds = array<i64: 16, 128>}, {pipeline_mode = #tpu.pipeline_mode<synchronous>, transform_indices = @transform_2, window_bounds = array<i64: 1, 128>}, {pipeline_mode = #tpu.pipeline_mode<synchronous>, transform_indices = @transform_3, window_bounds = array<i64: 128, 4>}, {pipeline_mode = #tpu.pipeline_mode<synchronous>, transform_indices = @transform_4, window_bounds = array<i64: 1, 4>}, {transform_indices = @transform_5, window_bounds = array<i64: 8, 4>}]} {
    %c0 = arith.constant 0 : index
    %c0_0 = arith.constant 0 : index
    %0 = vector.load %arg1[%c0, %c0_0] : memref<8x16xf32, #tpu.memory_space<vmem>>, vector<8x16xf32>
    %1 = arith.truncf %0 : vector<8x16xf32> to vector<8x16xbf16>
    %c0_1 = arith.constant 0 : index
    %c0_2 = arith.constant 0 : index
    %2 = vector.load %arg2[%c0_1, %c0_2] : memref<16x128xbf16, #tpu.memory_space<vmem>>, vector<16x128xbf16>
    %cst = arith.constant dense<0.000000e+00> : vector<8x128xf32>
    %3 = tpu.matmul %1, %2, %cst {dimension_numbers = #tpu.dot_dimension_numbers<[1], [0], [0], [1], [0, 0, 1, 1], [], []>} : vector<8x16xbf16>, vector<16x128xbf16>, vector<8x128xf32> -> vector<8x128xf32>
    %c0_3 = arith.constant 0 : index
    %c0_4 = arith.constant 0 : index
    %4 = vector.load %arg3[%c0_3, %c0_4] : memref<1x128xf32, #tpu.memory_space<vmem>>, vector<1x128xf32>
    %5 = vector.broadcast %4 : vector<1x128xf32> to vector<8x128xf32>
    %6 = arith.addf %3, %5 : vector<8x128xf32>
    %cst_5 = arith.constant 0.000000e+00 : f32
    %7 = vector.broadcast %cst_5 : f32 to vector<8x128xf32>
    %8 = arith.maximumf %6, %7 : vector<8x128xf32>
    %9 = arith.truncf %8 : vector<8x128xf32> to vector<8x128xbf16>
    %c0_6 = arith.constant 0 : index
    %c0_7 = arith.constant 0 : index
    %10 = vector.load %arg4[%c0_6, %c0_7] : memref<128x4xbf16, #tpu.memory_space<vmem>>, vector<128x4xbf16>
    %cst_8 = arith.constant dense<0.000000e+00> : vector<8x4xf32>
    %11 = tpu.matmul %9, %10, %cst_8 {dimension_numbers = #tpu.dot_dimension_numbers<[1], [0], [0], [1], [0, 0, 1, 1], [], []>} : vector<8x128xbf16>, vector<128x4xbf16>, vector<8x4xf32> -> vector<8x4xf32>
    %c0_9 = arith.constant 0 : index
    %c0_10 = arith.constant 0 : index
    %12 = vector.load %arg5[%c0_9, %c0_10] : memref<1x4xf32, #tpu.memory_space<vmem>>, vector<1x4xf32>
    %13 = vector.broadcast %12 : vector<1x4xf32> to vector<8x4xf32>
    %14 = arith.addf %11, %13 : vector<8x4xf32>
    %c0_11 = arith.constant 0 : index
    %c0_12 = arith.constant 0 : index
    %15 = vector.load %arg6[%c0_11, %c0_12] : memref<8x4xf32, #tpu.memory_space<vmem>>, vector<8x4xf32>
    tpu.vector_store %arg6[%c0_11, %c0_12], %14 {strides = array<i32>} : memref<8x4xf32, #tpu.memory_space<vmem>>, vector<8x4xf32>,
    return
  }
  func.func @transform_0(%arg0: i32) -> (i32, i32) {
    %c0_i32 = arith.constant 0 : i32
    %c0_i32_0 = arith.constant 0 : i32
    return %arg0, %c0_i32 : i32, i32
  }
  func.func @transform_1(%arg0: i32) -> (i32, i32) {
    %c0_i32 = arith.constant 0 : i32
    %c0_i32_0 = arith.constant 0 : i32
    %c0_i32_1 = arith.constant 0 : i32
    return %c0_i32, %c0_i32_0 : i32, i32
  }
  func.func @transform_2(%arg0: i32) -> (i32, i32) {
    %c0_i32 = arith.constant 0 : i32
    %c0_i32_0 = arith.constant 0 : i32
    %c0_i32_1 = arith.constant 0 : i32
    return %c0_i32, %c0_i32_0 : i32, i32
  }
  func.func @transform_3(%arg0: i32) -> (i32, i32) {
    %c0_i32 = arith.constant 0 : i32
    %c0_i32_0 = arith.constant 0 : i32
    %c0_i32_1 = arith.constant 0 : i32
    return %c0_i32, %c0_i32_0 : i32, i32
  }
  func.func @transform_4(%arg0: i32) -> (i32, i32) {
    %c0_i32 = arith.constant 0 : i32
    %c0_i32_0 = arith.constant 0 : i32
    %c0_i32_1 = arith.constant 0 : i32
    return %c0_i32, %c0_i32_0 : i32, i32
  }
  func.func @transform_5(%arg0: i32) -> (i32, i32) {
    %c0_i32 = arith.constant 0 : i32
    %c0_i32_0 = arith.constant 0 : i32
    return %arg0, %c0_i32 : i32, i32
  }
}

</mosaic_0001>

<llo_original>
// kernel: net_forward.1
$region0: #{net_forward.1}
  #allocation0 [shape = 'u32[]', space=smem, size = 0x4, offset = 0x4, fixed_abs, tag = 'smem constant byte address 0x4 - core index']
  #allocation1 [shape = 'u32[72,128]{1,0:T(1,128)}', space=vmem, size = 0x9000, scoped, tag = 'internal scratch']
  %s0 = inlined_call_operand.vmem [shape: f32[8,16], index: 0, kind: input, shape index: {}]
  %s1 = inlined_call_operand.vmem [shape: bf16[16,128], index: 1, kind: input, shape index: {}]
  %s2 = inlined_call_operand.vmem [shape: f32[1,128], index: 2, kind: input, shape index: {}]
  %s3 = inlined_call_operand.vmem [shape: bf16[128,4], index: 3, kind: input, shape index: {}]
  %s4 = inlined_call_operand.vmem [shape: f32[1,4], index: 4, kind: input, shape index: {}]
  %s5 = inlined_call_operand.vmem [shape: f32[8,4], index: 5, kind: output, shape index: {}]
  %s6 = sld [smem:[#allocation0]]
  $region30: #{net_forward.1} parent=0
    _
  %s8 = ssub.s32 1, %s6
  %s9 = scalar_select 0, %s8, %s6
  // Predicated region
  $region2: #{net_forward.1} parent=0 // pred_check
    _
  $region3: #{net_forward.1} parent=0 // pred_check_branch
    %11 = sbr.rel (0) target = $region5
  $region4: #{net_forward.1} parent=0 // pred_region
    _
  $region5: #{net_forward.1} parent=0 // pred_fallthru
    _
  // Predicated region
  $region6: #{net_forward.1} parent=0 // pred_check
    _
  $region7: #{net_forward.1} parent=0 // pred_check_branch
    %13 = sbr.rel (0) target = $region9
  $region8: #{net_forward.1} parent=0 // pred_region
    _
  $region9: #{net_forward.1} parent=0 // pred_fallthru
    _
  // Predicated region
  $region10: #{net_forward.1} parent=0 // pred_check
    _
  $region11: #{net_forward.1} parent=0 // pred_check_branch
    %15 = sbr.rel (0) target = $region13
  $region12: #{net_forward.1} parent=0 // pred_region
    _
  $region13: #{net_forward.1} parent=0 // pred_fallthru
    _
  // Predicated region
  $region14: #{net_forward.1} parent=0 // pred_check
    _
  $region15: #{net_forward.1} parent=0 // pred_check_branch
    %17 = sbr.rel (0) target = $region17
  $region16: #{net_forward.1} parent=0 // pred_region
    _
  $region17: #{net_forward.1} parent=0 // pred_fallthru
    _
  // Predicated region
  $region18: #{net_forward.1} parent=0 // pred_check
    _
  $region19: #{net_forward.1} parent=0 // pred_check_branch
    %19 = sbr.rel (0) target = $region21
  $region20: #{net_forward.1} parent=0 // pred_region
    _
  $region21: #{net_forward.1} parent=0 // pred_fallthru
    _
  %v21 = vld [vmem:[%s0] sm:$0xff]
  %v22 = vpack.c.bf16 %v21, %v21
  %v23 = vld [vmem:[%s1] sm:$0xf]
  %v24 = vld [vmem:[%s1 + $0x4] sm:$0xf]
  %v25 = vld [vmem:[%s2] sm:$0x1]
  %v27 = vperm.slane %v25, 0
  %v31 = vunpack.c.l.b16 %v23
  %v32 = vunpack.c.l.b16 %v24
  %v33 = vpack.c.b16 %v32, %v31
  %vm35 = vcmask 130048
  %v37 = vsel %vm35, %v22, 0
  %39 = vmatpush.bf16.msra.mxu0 0
  %40 = vmatpush.bf16.msra.mxu0 0
  %41 = vmatpush.bf16.msra.mxu0 0
  %42 = vmatpush.bf16.msra.mxu0 0
  %43 = vmatpush.bf16.msra.mxu0 0
  %44 = vmatpush.bf16.msra.mxu0 0
  %45 = vmatpush.bf16.msra.mxu0 0
  %46 = vmatpush.bf16.msra.mxu0 %v33
  %47 = vmatmul.bf16.gmra.mxu0 %v37
  %v48 = vpop.f32.mrf.mxu0
  %v49 = vadd.f32 %v27, %v48
  %v50 = vpop.f32.mrf.mxu0
  %51 = vdwg.mxu0
  %v52 = vmax.f32 %v49, 0.0
  %v53 = vpack.c.bf16 %v52, %v52
  %v54 = vld [vmem:[%s3] sm:$0xf]
  %v55 = vld [vmem:[%s3 + $0x4] sm:$0xf]
  %v56 = vld [vmem:[%s3 + $0x8] sm:$0xf]
  %v57 = vld [vmem:[%s3 + $0xc] sm:$0xf]
  %v58 = vld [vmem:[%s3 + $0x10] sm:$0xf]
  %v59 = vld [vmem:[%s3 + $0x14] sm:$0xf]
  %v60 = vld [vmem:[%s3 + $0x18] sm:$0xf]
  %v61 = vld [vmem:[%s3 + $0x1c] sm:$0xf]
  %v62 = vld [vmem:[%s3 + $0x20] sm:$0xf]
  %v63 = vld [vmem:[%s3 + $0x24] sm:$0xf]
  %v64 = vld [vmem:[%s3 + $0x28] sm:$0xf]
  %v65 = vld [vmem:[%s3 + $0x2c] sm:$0xf]
  %v66 = vld [vmem:[%s3 + $0x30] sm:$0xf]
  %v67 = vld [vmem:[%s3 + $0x34] sm:$0xf]
  %v68 = vld [vmem:[%s3 + $0x38] sm:$0xf]
  %v69 = vld [vmem:[%s3 + $0x3c] sm:$0xf]
  %v70 = vld [vmem:[%s4] sm:$0x1]
  %v72 = vperm.slane %v70, 0
  %v90 = vunpack.c.l.b16 %v54
  %v91 = vunpack.c.l.b16 %v55
  %v92 = vunpack.c.l.b16 %v56
  %v93 = vunpack.c.l.b16 %v57
  %v94 = vunpack.c.l.b16 %v58
  %v95 = vunpack.c.l.b16 %v59
  %v96 = vunpack.c.l.b16 %v60
  %v97 = vunpack.c.l.b16 %v61
  %v98 = vunpack.c.l.b16 %v62
  %v99 = vunpack.c.l.b16 %v63
  %v100 = vunpack.c.l.b16 %v64
  %v101 = vunpack.c.l.b16 %v65
  %v102 = vunpack.c.l.b16 %v66
  %v103 = vunpack.c.l.b16 %v67
  %v104 = vunpack.c.l.b16 %v68
  %v105 = vunpack.c.l.b16 %v69
  %v106 = vpack.c.b16 %v91, %v90
  %v107 = vpack.c.b16 %v93, %v92
  %v108 = vpack.c.b16 %v95, %v94
  %v109 = vpack.c.b16 %v97, %v96
  %v110 = vpack.c.b16 %v99, %v98
  %v111 = vpack.c.b16 %v101, %v100
  %v112 = vpack.c.b16 %v103, %v102
  %v113 = vpack.c.b16 %v105, %v104
  %122 = vmatpush.bf16.msra.mxu0 %v113
  %123 = vmatpush.bf16.msra.mxu0 %v112
  %124 = vmatpush.bf16.msra.mxu0 %v111
  %125 = vmatpush.bf16.msra.mxu0 %v110
  %126 = vmatpush.bf16.msra.mxu0 %v109
  %127 = vmatpush.bf16.msra.mxu0 %v108
  %128 = vmatpush.bf16.msra.mxu0 %v107
  %129 = vmatpush.bf16.msra.mxu0 %v106
  %130 = vmatmul.bf16.gmra.mxu0 %v53
  %v131 = vpop.f32.mrf.mxu0
  %v132 = vadd.f32 %v72, %v131
  %v133 = vpop.f32.mrf.mxu0
  %134 = vdwg.mxu0
  %vm135 = vcmask 31744
  %136 = vst.msk [vmem:[%s5] sm:$0xff] %vm135, %v132
  // Predicated region
  $region22: #{net_forward.1} parent=0 // pred_check
    _
  $region23: #{net_forward.1} parent=0 // pred_check_branch
    %138 = sbr.rel (0) target = $region25
  $region24: #{net_forward.1} parent=0 // pred_region
    _
  $region25: #{net_forward.1} parent=0 // pred_fallthru
    _
  // Predicated region
  $region26: #{net_forward.1} parent=0 // pred_check
    _
  $region27: #{net_forward.1} parent=0 // pred_check_branch
    %140 = sbr.rel (0) target = $region29
  $region28: #{net_forward.1} parent=0 // pred_region
    _
  $region29: #{net_forward.1} parent=0 // pred_fallthru
    _

</llo_original>
